<compile_context>
chip_gen: v7x
topology: tpu7x:2x2x1
jax: 0.10.0
libtpu: 0.0.40
codegen_flags: <defaults>
</compile_context>

<pallas_src>
import jax
import jax.numpy as jnp
import numpy as np
from jax.experimental import pallas as pl
from jax.experimental.pallas import tpu as pltpu

EPS_ASP = 1e-12   # speechbrain AttentiveStatisticsPooling eps (variance clamp)
EPS_BN = 1e-5     # torch.nn.BatchNorm1d eps


def _vmem_budget_bytes():
    """Per-chip scoped-VMEM budget for the pallas_call."""
    try:
        info = pltpu.get_tpu_info()
        for attr in ("vmem_capacity_bytes", "vmem_bytes", "vmem_size_bytes"):
            cap = getattr(info, attr, None)
            if cap:
                # ~30% headroom for compiler scratch; never above 96 MiB even
                # on 128-MiB parts (v5e/v6e); v7x (64 MiB/TC) lands ~45 MiB.
                return int(min(96 * 1024 * 1024, int(cap) * 7 // 10))
    except Exception:
        pass
    return 48 * 1024 * 1024   # safe fallback: fits v7x's 64 MiB physical VMEM


# --------------------------------------------------------------------------- #
# Pallas kernel: fused forward for one batch block (Nb rows, full T).
# --------------------------------------------------------------------------- #
def _w2v_kernel(frames_ref,        # (Nb, T, F) f32  raw frames (cast in-kernel)
                wfeat_ref,         # (F, C)     bf16 proxy wav2vec2 encoder
                wtdnn_ref,         # (3C, A)    bf16 ASP TDNN conv (k=1)
                wattn_ref,         # (A, C)     bf16 ASP attention conv (k=1)
                wfc_ref,           # (2C, E)    bf16 fc with pooling-BN folded
                vec_ref,           # (8, 128)   f32  packed small vectors
                out_ref):          # (Nb, E)    f32
    nb, t, f = frames_ref.shape
    c = wfeat_ref.shape[1]
    a_dim = wtdnn_ref.shape[1]
    e_dim = wfc_ref.shape[1]

    # packed small parameters: one row per vector in an (8,128) slab
    b_feat = vec_ref[0:1, :c]        # (1, C)
    b_tdnn = vec_ref[1:2, :a_dim]    # (1, A)
    scale1 = vec_ref[2:3, :a_dim]    # folded eval BatchNorm1d(A)
    shift1 = vec_ref[3:4, :a_dim]
    b_attn = vec_ref[4:5, :c]        # (1, C)
    b_fc = vec_ref[5:6, :e_dim]      # fc bias with pooling BN folded in

    # ---- proxy wav2vec2 frame encoder: bf16 MXU operands, f32 accumulate ---
    frames = frames_ref[...].astype(jnp.bfloat16).reshape(nb * t, f)
    x2 = jnp.dot(frames, wfeat_ref[...],
                 preferred_element_type=jnp.float32) + b_feat     # (Nb*T, C)
    x = x2.reshape(nb, t, c)                                      # (Nb, T, C)

    # ---- AttentiveStatisticsPooling (global_context=True, lengths=None) ----
    # uniform-weight statistics, single pass: E[x^2] - mean^2     (all f32)
    mean = jnp.mean(x, axis=1)                                    # (Nb, C)
    ex2 = jnp.mean(x * x, axis=1)
    std = jnp.sqrt(jnp.maximum(ex2 - mean * mean, EPS_ASP))       # (Nb, C)

    # TDNNBlock conv(k=1): W_tdnn consumed as three (C,A) row blocks so the
    # (Nb,T,3C) concat/broadcast never exists.
    wt = wtdnn_ref[...]                                           # (3C, A) bf16
    ax = jnp.dot(x2.astype(jnp.bfloat16), wt[0:c],
                 preferred_element_type=jnp.float32)              # (Nb*T, A)
    ams = (jnp.dot(mean.astype(jnp.bfloat16), wt[c:2 * c],
                   preferred_element_type=jnp.float32)
           + jnp.dot(std.astype(jnp.bfloat16), wt[2 * c:],
                     preferred_element_type=jnp.float32)
           + b_tdnn)                                              # (Nb, A)
    act = ax.reshape(nb, t, a_dim) + ams[:, None, :]              # (Nb, T, A)
    act = jnp.maximum(act, 0.0)                                   # ReLU
    act = act * scale1 + shift1                                   # eval BN1 FMA
    act = jnp.tanh(act)

    # attention conv (k=1): A -> C, then softmax over time (exact division)
    logits = (jnp.dot(act.reshape(nb * t, a_dim).astype(jnp.bfloat16),
                      wattn_ref[...], preferred_element_type=jnp.float32)
              + b_attn).reshape(nb, t, c)                         # (Nb, T, C)
    m = jnp.max(logits, axis=1, keepdims=True)
    e = jnp.exp(logits - m)
    w = e / jnp.sum(e, axis=1, keepdims=True)

    # attention-weighted statistics, single pass: E_w[x^2] - mu^2
    wx = w * x
    mu = jnp.sum(wx, axis=1)                                      # (Nb, C)
    wx2 = jnp.sum(wx * x, axis=1)
    sg = jnp.sqrt(jnp.maximum(wx2 - mu * mu, EPS_ASP))            # (Nb, C)

    # fc (pooling_module_bn folded into W_fc/b_fc); split W_fc -> no concat
    wfc = wfc_ref[...]                                            # (2C, E) bf16
    emb = (jnp.dot(mu.astype(jnp.bfloat16), wfc[0:c],
                   preferred_element_type=jnp.float32)
           + jnp.dot(sg.astype(jnp.bfloat16), wfc[c:],
                     preferred_element_type=jnp.float32)
           + b_fc)                                                # (Nb, E)
    out_ref[...] = emb


# --------------------------------------------------------------------------- #
# Model wrapper (parameter setup, eval-mode folding, pallas_call glue).
# --------------------------------------------------------------------------- #
class W2VPallas:
    def __init__(self, key, *, embedding_dim=32, output_dim=8,
                 w2v_output_size=64, frame_size=160, batch_block=None):
        self.embedding_dim = embedding_dim
        self.output_dim = output_dim
        self.c = w2v_output_size
        self.attn_channels = embedding_dim // 2
        self.frame_size = frame_size
        self.batch_block = batch_block            # None -> auto-size per chip
        self.vmem_budget = _vmem_budget_bytes()

        # TODO(synk): the (8,128) vector slab + fully-VMEM-resident weight
        # strategy assume C, A, E <= 128; the real wav2vec2-xls-r width (1024)
        # needs a generalized packing / tiled-weight scheme.
        assert self.c <= 128 and self.attn_channels <= 128 and embedding_dim <= 128

        c, a, e, f = self.c, self.attn_channels, embedding_dim, frame_size
        ks = jax.random.split(key, 8)
        norm = jax.random.normal
        p = {
            # proxy wav2vec2 frame encoder
            "W_feat": norm(ks[0], (f, c), jnp.float32) / np.sqrt(f),
            "b_feat": norm(ks[1], (1, c), jnp.float32) * 0.01,
            # ASP TDNNBlock conv: 3C -> A  (rows ordered [x; mean; std])
            "W_tdnn": norm(ks[2], (3 * c, a), jnp.float32) / np.sqrt(3 * c),
            "b_tdnn": norm(ks[3], (1, a), jnp.float32) * 0.01,
            # ASP TDNNBlock BatchNorm1d(A): fresh-module init
            "g1": jnp.ones((1, a), jnp.float32),
            "b1": jnp.zeros((1, a), jnp.float32),
            "rm1": jnp.zeros((1, a), jnp.float32),
            "rv1": jnp.ones((1, a), jnp.float32),
            # ASP attention conv: A -> C
            "W_attn": norm(ks[4], (a, c), jnp.float32) / np.sqrt(a),
            "b_attn": norm(ks[5], (1, c), jnp.float32) * 0.01,
            # pooling_module_bn: BatchNorm1d(2C): fresh-module init
            "g2": jnp.ones((1, 2 * c), jnp.float32),
            "b2": jnp.zeros((1, 2 * c), jnp.float32),
            "rm2": jnp.zeros((1, 2 * c), jnp.float32),
            "rv2": jnp.ones((1, 2 * c), jnp.float32),
            # fc: Linear(2C -> E)
            "W_fc": norm(ks[6], (2 * c, e), jnp.float32) / np.sqrt(2 * c),
            "b_fc": norm(ks[7], (1, e), jnp.float32) * 0.01,
        }
        self.params = p
        self._prep_inference_params()

    # ------------------------------------------------------------------ #
    def _prep_inference_params(self):
        """Eval-mode folding + packing, done once host-side."""
        p = self.params
        c, a, e = self.c, self.attn_channels, self.embedding_dim

        # Fold BN1 (after ReLU, before tanh) into a single FMA.
        scale1 = p["g1"] / jnp.sqrt(p["rv1"] + EPS_BN)             # (1, A)
        shift1 = p["b1"] - p["rm1"] * scale1                       # (1, A)

        # Fold BN2 (on pooled stats) straight into the fc weights/bias.
        scale2 = p["g2"] / jnp.sqrt(p["rv2"] + EPS_BN)             # (1, 2C)
        shift2 = p["b2"] - p["rm2"] * scale2                       # (1, 2C)
        w_fc_folded = p["W_fc"] * scale2.reshape(2 * c, 1)         # (2C, E)
        b_fc_folded = shift2 @ p["W_fc"] + p["b_fc"]               # (1, E)

        # Pack all small vectors into one (8,128) slab, one row per vector.
        slab = jnp.zeros((8, 128), jnp.float32)
        slab = slab.at[0, :c].set(p["b_feat"][0])
        slab = slab.at[1, :a].set(p["b_tdnn"][0])
        slab = slab.at[2, :a].set(scale1[0])
        slab = slab.at[3, :a].set(shift1[0])
        slab = slab.at[4, :c].set(p["b_attn"][0])
        slab = slab.at[5, :e].set(b_fc_folded[0])

        # All matmul weights stored bf16 (MXU-native on every generation);
        # f32 accumulation happens in-kernel via preferred_element_type.
        self.w_feat = p["W_feat"].astype(jnp.bfloat16)             # (F, C)
        self.w_tdnn = p["W_tdnn"].astype(jnp.bfloat16)             # (3C, A)
        self.w_attn = p["W_attn"].astype(jnp.bfloat16)             # (A, C)
        self.w_fc = w_fc_folded.astype(jnp.bfloat16)               # (2C, E)
        self.vec_slab = slab

    # ------------------------------------------------------------------ #
    def _frames(self, waveform):
        n, l = waveform.shape
        t = l // self.frame_size
        return waveform[:, : t * self.frame_size].reshape(n, t, self.frame_size)

    # ------------------------------------------------------------------ #
    def _choose_batch_block(self, n, t):
        if self.batch_block is not None:
            return max(1, min(int(self.batch_block), n))
        f, c, a = self.frame_size, self.c, self.attn_channels
        # per-batch-row VMEM bytes for one grid step: double-buffered f32
        # frames block + its bf16 copy + ~8 f32 (T,C) and ~4 f32 (T,A)
        # time-major temporaries.
        per_row = t * (2 * f * 4 + f * 2 + 8 * c * 4 + 4 * a * 4)
        nb_vmem = max(1, (self.vmem_budget * 4 // 5) // max(per_row, 1))
        # enough time-major rows per step to fill the 256-wide MXU several
        # times over and amortize the ~0.35us per-grid-step overhead
        nb_rows = max(1, -(-1024 // t))
        nb = min(nb_vmem, nb_rows)
        if n >= 2:
            nb = min(nb, -(-n // 2))     # g >= 2: both v7x TCs get work
        return max(1, min(nb, n))

    # ------------------------------------------------------------------ #
    def embedding(self, waveform):
        frames = self._frames(waveform)          # (N, T, F) f32 — no pad/cast copy
        n, t, f = frames.shape
        e = self.embedding_dim

        nb = self._choose_batch_block(n, t)
        g = pl.cdiv(n, nb)

        out = pl.pallas_call(
            _w2v_kernel,
            out_shape=jax.ShapeDtypeStruct((g, nb, e), jnp.float32),
            grid=(g,),
            in_specs=[
                # frames streamed per batch block (double-buffered by Pallas);
                # last two block dims == full array dims -> no HBM padding.
                # (On v7x, sweeping pipeline_mode=pl.Buffered(3) here can hide
                #  per-step DMA issue latency at the cost of one extra block.)
                pl.BlockSpec((nb, t, f), lambda b: (b, 0, 0)),
                # weights pinned (constant index maps -> fetched once)
                pl.BlockSpec(self.w_feat.shape, lambda b: (0, 0)),
                pl.BlockSpec(self.w_tdnn.shape, lambda b: (0, 0)),
                pl.BlockSpec(self.w_attn.shape, lambda b: (0, 0)),
                pl.BlockSpec(self.w_fc.shape, lambda b: (0, 0)),
                pl.BlockSpec((8, 128), lambda b: (0, 0)),
            ],
            # squeezed leading dim -> kernel writes a plain (Nb, E) tile
            out_specs=pl.BlockSpec((None, nb, e), lambda b: (b, 0, 0)),
            compiler_params=pltpu.CompilerParams(
                dimension_semantics=("parallel",),   # shard batch blocks
                vmem_limit_bytes=self.vmem_budget),
        )(frames, self.w_feat, self.w_tdnn, self.w_attn, self.w_fc,
          self.vec_slab)
        return out.reshape(g * nb, e)[:n]

    def forward(self, waveform, labels=None):
        # eval path of W2V.forward (self.training == False)
        emb = self.embedding(waveform)
        return {"embedding": emb}

    # ------------------------------------------------------------------ #
    # Pure-JAX reference of the same (un-folded) math, mirroring the kernel's
    # bf16-operand / f32-accumulate matmul precision, for correctness checks.
    def reference(self, waveform):
        p = self.params
        bf = jnp.bfloat16
        x = self._frames(waveform)
        x = jnp.dot(x.astype(bf), p["W_feat"].astype(bf),
                    preferred_element_type=jnp.float32) + p["b_feat"]
        mean = x.mean(1, keepdims=True)
        std = jnp.sqrt(jnp.maximum(((x - mean) ** 2).mean(1, keepdims=True),
                                   EPS_ASP))
        attn_in = jnp.concatenate(
            [x, jnp.broadcast_to(mean, x.shape), jnp.broadcast_to(std, x.shape)],
            -1)
        a = jnp.dot(attn_in.astype(bf), p["W_tdnn"].astype(bf),
                    preferred_element_type=jnp.float32) + p["b_tdnn"]
        a = jnp.maximum(a, 0.0)
        a = (a - p["rm1"]) / jnp.sqrt(p["rv1"] + EPS_BN) * p["g1"] + p["b1"]
        a = jnp.tanh(a)
        logits = jnp.dot(a.astype(bf), p["W_attn"].astype(bf),
                         preferred_element_type=jnp.float32) + p["b_attn"]
        w = jax.nn.softmax(logits, axis=1)
        mu = (w * x).sum(1)
        sg = jnp.sqrt(jnp.maximum((w * (x - mu[:, None, :]) ** 2).sum(1),
                                  EPS_ASP))
        pooled = jnp.concatenate([mu, sg], -1)
        pooled = ((pooled - p["rm2"]) / jnp.sqrt(p["rv2"] + EPS_BN)
                  * p["g2"] + p["b2"])
        return (jnp.dot(pooled.astype(bf), p["W_fc"].astype(bf),
                        preferred_element_type=jnp.float32) + p["b_fc"])


if __name__ == "__main__":
    key = jax.random.PRNGKey(0)
    k_param, k_x = jax.random.split(key)

    model = W2VPallas(k_param, embedding_dim=32, output_dim=8,
                      w2v_output_size=64, frame_size=160)

    N, T = 4, 8
    L = T * model.frame_size                       # waveform length = 1280
    waveform = jax.random.normal(k_x, (N, L), dtype=jnp.float32)

    out = model.forward(waveform)
    emb = jax.block_until_ready(out["embedding"])
    assert emb.shape == (N, model.embedding_dim)

    ref = model.reference(waveform)
    # tolerance covers bf16-operand rounding interacting with the eval-BN
    # folding, split-dot reassociation, and single-pass variance rewrites
    np.testing.assert_allclose(np.asarray(emb), np.asarray(ref),
                               rtol=5e-3, atol=5e-3)
    print("KERNEL_OK")
</pallas_src>

<mosaic_0001>
module attributes {stable_mosaic.version = 11 : i64} {
  func.func @_w2v_kernel(%arg0: i32, %arg1: memref<2x8x160xf32, #tpu.memory_space<vmem>>, %arg2: memref<160x64xbf16, #tpu.memory_space<vmem>>, %arg3: memref<192x16xbf16, #tpu.memory_space<vmem>>, %arg4: memref<16x64xbf16, #tpu.memory_space<vmem>>, %arg5: memref<128x32xbf16, #tpu.memory_space<vmem>>, %arg6: memref<8x128xf32, #tpu.memory_space<vmem>>, %arg7: memref<1x2x32xf32, #tpu.memory_space<vmem>>) attributes {dimension_semantics = [#tpu.dimension_semantics<parallel>], iteration_bounds = array<i64: 2>, scalar_prefetch = 0 : i64, scratch_operands = 0 : i64, tpu.core_type = #tpu.core_type<tc>, window_params = [{transform_indices = @transform_0, window_bounds = array<i64: 2, 8, 160>}, {pipeline_mode = #tpu.pipeline_mode<synchronous>, transform_indices = @transform_1, window_bounds = array<i64: 160, 64>}, {pipeline_mode = #tpu.pipeline_mode<synchronous>, transform_indices = @transform_2, window_bounds = array<i64: 192, 16>}, {pipeline_mode = #tpu.pipeline_mode<synchronous>, transform_indices = @transform_3, window_bounds = array<i64: 16, 64>}, {pipeline_mode = #tpu.pipeline_mode<synchronous>, transform_indices = @transform_4, window_bounds = array<i64: 128, 32>}, {pipeline_mode = #tpu.pipeline_mode<synchronous>, transform_indices = @transform_5, window_bounds = array<i64: 8, 128>}, {transform_indices = @transform_6, window_bounds = array<i64: 1, 2, 32>}]} {
    %c0 = arith.constant 0 : index
    %c0_0 = arith.constant 0 : index
    %0 = vector.load %arg6[%c0, %c0_0] : memref<8x128xf32, #tpu.memory_space<vmem>>, vector<1x64xf32>
    %c1 = arith.constant 1 : index
    %c0_1 = arith.constant 0 : index
    %1 = vector.load %arg6[%c1, %c0_1] : memref<8x128xf32, #tpu.memory_space<vmem>>, vector<1x16xf32>
    %c2 = arith.constant 2 : index
    %c0_2 = arith.constant 0 : index
    %2 = vector.load %arg6[%c2, %c0_2] : memref<8x128xf32, #tpu.memory_space<vmem>>, vector<1x16xf32>
    %c3 = arith.constant 3 : index
    %c0_3 = arith.constant 0 : index
    %3 = vector.load %arg6[%c3, %c0_3] : memref<8x128xf32, #tpu.memory_space<vmem>>, vector<1x16xf32>
    %c4 = arith.constant 4 : index
    %c0_4 = arith.constant 0 : index
    %4 = vector.load %arg6[%c4, %c0_4] : memref<8x128xf32, #tpu.memory_space<vmem>>, vector<1x64xf32>
    %c5 = arith.constant 5 : index
    %c0_5 = arith.constant 0 : index
    %5 = vector.load %arg6[%c5, %c0_5] : memref<8x128xf32, #tpu.memory_space<vmem>>, vector<1x32xf32>
    %c0_6 = arith.constant 0 : index
    %c0_7 = arith.constant 0 : index
    %c0_8 = arith.constant 0 : index
    %6 = vector.load %arg1[%c0_6, %c0_7, %c0_8] : memref<2x8x160xf32, #tpu.memory_space<vmem>>, vector<2x8x160xf32>
    %7 = arith.truncf %6 : vector<2x8x160xf32> to vector<2x8x160xbf16>
    %8 = vector.shape_cast %7 : vector<2x8x160xbf16> to vector<16x160xbf16>
    %c0_9 = arith.constant 0 : index
    %c0_10 = arith.constant 0 : index
    %9 = vector.load %arg2[%c0_9, %c0_10] : memref<160x64xbf16, #tpu.memory_space<vmem>>, vector<160x64xbf16>
    %cst = arith.constant dense<0.000000e+00> : vector<16x64xf32>
    %10 = tpu.matmul %8, %9, %cst {dimension_numbers = #tpu.dot_dimension_numbers<[1], [0], [0], [1], [0, 0, 1, 1], [], []>} : vector<16x160xbf16>, vector<160x64xbf16>, vector<16x64xf32> -> vector<16x64xf32>
    %11 = vector.broadcast %0 : vector<1x64xf32> to vector<16x64xf32>
    %12 = arith.addf %10, %11 : vector<16x64xf32>
    %13 = vector.shape_cast %12 : vector<16x64xf32> to vector<2x8x64xf32>
    %cst_11 = arith.constant dense<0.000000e+00> : vector<2x64xf32>
    %14 = vector.multi_reduction <add>, %13, %cst_11 [1] : vector<2x8x64xf32> to vector<2x64xf32>
    %cst_12 = arith.constant 8.000000e+00 : f32
    %15 = vector.broadcast %cst_12 : f32 to vector<2x64xf32>
    %16 = arith.divf %14, %15 : vector<2x64xf32>
    %17 = arith.mulf %13, %13 : vector<2x8x64xf32>
    %cst_13 = arith.constant dense<0.000000e+00> : vector<2x64xf32>
    %18 = vector.multi_reduction <add>, %17, %cst_13 [1] : vector<2x8x64xf32> to vector<2x64xf32>
    %cst_14 = arith.constant 8.000000e+00 : f32
    %19 = vector.broadcast %cst_14 : f32 to vector<2x64xf32>
    %20 = arith.divf %18, %19 : vector<2x64xf32>
    %21 = arith.mulf %16, %16 : vector<2x64xf32>
    %22 = arith.subf %20, %21 : vector<2x64xf32>
    %cst_15 = arith.constant 9.99999996E-13 : f32
    %23 = vector.broadcast %cst_15 : f32 to vector<2x64xf32>
    %24 = arith.maximumf %22, %23 : vector<2x64xf32>
    %25 = math.sqrt %24 : vector<2x64xf32>
    %c0_16 = arith.constant 0 : index
    %c0_17 = arith.constant 0 : index
    %26 = vector.load %arg3[%c0_16, %c0_17] : memref<192x16xbf16, #tpu.memory_space<vmem>>, vector<192x16xbf16>
    %27 = arith.truncf %12 : vector<16x64xf32> to vector<16x64xbf16>
    %28 = vector.extract_strided_slice %26 {offsets = [0, 0], sizes = [64, 16], strides = [1, 1]} : vector<192x16xbf16> to vector<64x16xbf16>
    %cst_18 = arith.constant dense<0.000000e+00> : vector<16x16xf32>
    %29 = tpu.matmul %27, %28, %cst_18 {dimension_numbers = #tpu.dot_dimension_numbers<[1], [0], [0], [1], [0, 0, 1, 1], [], []>} : vector<16x64xbf16>, vector<64x16xbf16>, vector<16x16xf32> -> vector<16x16xf32>
    %30 = arith.truncf %16 : vector<2x64xf32> to vector<2x64xbf16>
    %31 = vector.extract_strided_slice %26 {offsets = [64, 0], sizes = [64, 16], strides = [1, 1]} : vector<192x16xbf16> to vector<64x16xbf16>
    %cst_19 = arith.constant dense<0.000000e+00> : vector<2x16xf32>
    %32 = tpu.matmul %30, %31, %cst_19 {dimension_numbers = #tpu.dot_dimension_numbers<[1], [0], [0], [1], [0, 0, 1, 1], [], []>} : vector<2x64xbf16>, vector<64x16xbf16>, vector<2x16xf32> -> vector<2x16xf32>
    %33 = arith.truncf %25 : vector<2x64xf32> to vector<2x64xbf16>
    %34 = vector.extract_strided_slice %26 {offsets = [128, 0], sizes = [64, 16], strides = [1, 1]} : vector<192x16xbf16> to vector<64x16xbf16>
    %cst_20 = arith.constant dense<0.000000e+00> : vector<2x16xf32>
    %35 = tpu.matmul %33, %34, %cst_20 {dimension_numbers = #tpu.dot_dimension_numbers<[1], [0], [0], [1], [0, 0, 1, 1], [], []>} : vector<2x64xbf16>, vector<64x16xbf16>, vector<2x16xf32> -> vector<2x16xf32>
    %36 = arith.addf %32, %35 : vector<2x16xf32>
    %37 = vector.broadcast %1 : vector<1x16xf32> to vector<2x16xf32>
    %38 = arith.addf %36, %37 : vector<2x16xf32>
    %39 = vector.shape_cast %29 : vector<16x16xf32> to vector<2x8x16xf32>
    %40 = vector.shape_cast %38 : vector<2x16xf32> to vector<2x1x16xf32>
    %41 = vector.broadcast %40 : vector<2x1x16xf32> to vector<2x8x16xf32>
    %42 = arith.addf %39, %41 : vector<2x8x16xf32>
    %cst_21 = arith.constant 0.000000e+00 : f32
    %43 = vector.broadcast %cst_21 : f32 to vector<2x8x16xf32>
    %44 = arith.maximumf %42, %43 : vector<2x8x16xf32>
    %45 = vector.shape_cast %2 : vector<1x16xf32> to vector<1x1x16xf32>
    %46 = vector.broadcast %45 : vector<1x1x16xf32> to vector<2x8x16xf32>
    %47 = arith.mulf %44, %46 : vector<2x8x16xf32>
    %48 = vector.shape_cast %3 : vector<1x16xf32> to vector<1x1x16xf32>
    %49 = vector.broadcast %48 : vector<1x1x16xf32> to vector<2x8x16xf32>
    %50 = arith.addf %47, %49 : vector<2x8x16xf32>
    %51 = math.tanh %50 : vector<2x8x16xf32>
    %52 = vector.shape_cast %51 : vector<2x8x16xf32> to vector<16x16xf32>
    %53 = arith.truncf %52 : vector<16x16xf32> to vector<16x16xbf16>
    %c0_22 = arith.constant 0 : index
    %c0_23 = arith.constant 0 : index
    %54 = vector.load %arg4[%c0_22, %c0_23] : memref<16x64xbf16, #tpu.memory_space<vmem>>, vector<16x64xbf16>
    %cst_24 = arith.constant dense<0.000000e+00> : vector<16x64xf32>
    %55 = tpu.matmul %53, %54, %cst_24 {dimension_numbers = #tpu.dot_dimension_numbers<[1], [0], [0], [1], [0, 0, 1, 1], [], []>} : vector<16x16xbf16>, vector<16x64xbf16>, vector<16x64xf32> -> vector<16x64xf32>
    %56 = vector.broadcast %4 : vector<1x64xf32> to vector<16x64xf32>
    %57 = arith.addf %55, %56 : vector<16x64xf32>
    %58 = vector.shape_cast %57 : vector<16x64xf32> to vector<2x8x64xf32>
    %cst_25 = arith.constant dense<0xFF800000> : vector<2x64xf32>
    %59 = vector.multi_reduction <maximumf>, %58, %cst_25 [1] : vector<2x8x64xf32> to vector<2x64xf32>
    %60 = vector.shape_cast %59 : vector<2x64xf32> to vector<2x1x64xf32>
    %61 = vector.broadcast %60 : vector<2x1x64xf32> to vector<2x8x64xf32>
    %62 = arith.subf %58, %61 : vector<2x8x64xf32>
    %63 = math.exp %62 : vector<2x8x64xf32>
    %cst_26 = arith.constant dense<0.000000e+00> : vector<2x64xf32>
    %64 = vector.multi_reduction <add>, %63, %cst_26 [1] : vector<2x8x64xf32> to vector<2x64xf32>
    %65 = vector.shape_cast %64 : vector<2x64xf32> to vector<2x1x64xf32>
    %66 = vector.broadcast %65 : vector<2x1x64xf32> to vector<2x8x64xf32>
    %67 = arith.divf %63, %66 : vector<2x8x64xf32>
    %68 = arith.mulf %67, %13 : vector<2x8x64xf32>
    %cst_27 = arith.constant dense<0.000000e+00> : vector<2x64xf32>
    %69 = vector.multi_reduction <add>, %68, %cst_27 [1] : vector<2x8x64xf32> to vector<2x64xf32>
    %70 = arith.mulf %68, %13 : vector<2x8x64xf32>
    %cst_28 = arith.constant dense<0.000000e+00> : vector<2x64xf32>
    %71 = vector.multi_reduction <add>, %70, %cst_28 [1] : vector<2x8x64xf32> to vector<2x64xf32>
    %72 = arith.mulf %69, %69 : vector<2x64xf32>
    %73 = arith.subf %71, %72 : vector<2x64xf32>
    %cst_29 = arith.constant 9.99999996E-13 : f32
    %74 = vector.broadcast %cst_29 : f32 to vector<2x64xf32>
    %75 = arith.maximumf %73, %74 : vector<2x64xf32>
    %76 = math.sqrt %75 : vector<2x64xf32>
    %c0_30 = arith.constant 0 : index
    %c0_31 = arith.constant 0 : index
    %77 = vector.load %arg5[%c0_30, %c0_31] : memref<128x32xbf16, #tpu.memory_space<vmem>>, vector<128x32xbf16>
    %78 = arith.truncf %69 : vector<2x64xf32> to vector<2x64xbf16>
    %79 = vector.extract_strided_slice %77 {offsets = [0, 0], sizes = [64, 32], strides = [1, 1]} : vector<128x32xbf16> to vector<64x32xbf16>
    %cst_32 = arith.constant dense<0.000000e+00> : vector<2x32xf32>
    %80 = tpu.matmul %78, %79, %cst_32 {dimension_numbers = #tpu.dot_dimension_numbers<[1], [0], [0], [1], [0, 0, 1, 1], [], []>} : vector<2x64xbf16>, vector<64x32xbf16>, vector<2x32xf32> -> vector<2x32xf32>
    %81 = arith.truncf %76 : vector<2x64xf32> to vector<2x64xbf16>
    %82 = vector.extract_strided_slice %77 {offsets = [64, 0], sizes = [64, 32], strides = [1, 1]} : vector<128x32xbf16> to vector<64x32xbf16>
    %cst_33 = arith.constant dense<0.000000e+00> : vector<2x32xf32>
    %83 = tpu.matmul %81, %82, %cst_33 {dimension_numbers = #tpu.dot_dimension_numbers<[1], [0], [0], [1], [0, 0, 1, 1], [], []>} : vector<2x64xbf16>, vector<64x32xbf16>, vector<2x32xf32> -> vector<2x32xf32>
    %84 = arith.addf %80, %83 : vector<2x32xf32>
    %85 = vector.broadcast %5 : vector<1x32xf32> to vector<2x32xf32>
    %86 = arith.addf %84, %85 : vector<2x32xf32>
    %c0_34 = arith.constant 0 : index
    %c0_35 = arith.constant 0 : index
    %c0_36 = arith.constant 0 : index
    %87 = vector.load %arg7[%c0_34, %c0_35, %c0_36] : memref<1x2x32xf32, #tpu.memory_space<vmem>>, vector<1x2x32xf32>
    %88 = vector.shape_cast %87 : vector<1x2x32xf32> to vector<2x32xf32>
    %89 = vector.shape_cast %86 : vector<2x32xf32> to vector<1x2x32xf32>
    tpu.vector_store %arg7[%c0_34, %c0_35, %c0_36], %89 {strides = array<i32>} : memref<1x2x32xf32, #tpu.memory_space<vmem>>, vector<1x2x32xf32>,
    return
  }
  func.func @transform_0(%arg0: i32) -> (i32, i32, i32) {
    %c0_i32 = arith.constant 0 : i32
    %c0_i32_0 = arith.constant 0 : i32
    %c0_i32_1 = arith.constant 0 : i32
    return %arg0, %c0_i32, %c0_i32_0 : i32, i32, i32
  }
  func.func @transform_1(%arg0: i32) -> (i32, i32) {
    %c0_i32 = arith.constant 0 : i32
    %c0_i32_0 = arith.constant 0 : i32
    %c0_i32_1 = arith.constant 0 : i32
    return %c0_i32, %c0_i32_0 : i32, i32
  }
  func.func @transform_2(%arg0: i32) -> (i32, i32) {
    %c0_i32 = arith.constant 0 : i32
    %c0_i32_0 = arith.constant 0 : i32
    %c0_i32_1 = arith.constant 0 : i32
    return %c0_i32, %c0_i32_0 : i32, i32
  }
  func.func @transform_3(%arg0: i32) -> (i32, i32) {
    %c0_i32 = arith.constant 0 : i32
    %c0_i32_0 = arith.constant 0 : i32
    %c0_i32_1 = arith.constant 0 : i32
    return %c0_i32, %c0_i32_0 : i32, i32
  }
  func.func @transform_4(%arg0: i32) -> (i32, i32) {
    %c0_i32 = arith.constant 0 : i32
    %c0_i32_0 = arith.constant 0 : i32
    %c0_i32_1 = arith.constant 0 : i32
    return %c0_i32, %c0_i32_0 : i32, i32
  }
  func.func @transform_5(%arg0: i32) -> (i32, i32) {
    %c0_i32 = arith.constant 0 : i32
    %c0_i32_0 = arith.constant 0 : i32
    %c0_i32_1 = arith.constant 0 : i32
    return %c0_i32, %c0_i32_0 : i32, i32
  }
  func.func @transform_6(%arg0: i32) -> (i32, i32, i32) {
    %c0_i32 = arith.constant 0 : i32
    %c0_i32_0 = arith.constant 0 : i32
    %c0_i32_1 = arith.constant 0 : i32
    return %arg0, %c0_i32, %c0_i32_0 : i32, i32, i32
  }
}

</mosaic_0001>

<llo_original>
// kernel: tpu_custom_call.1
$region0: #{tpu_custom_call.1}
  #allocation0 [shape = 'u32[]', space=smem, size = 0x4, offset = 0x4, fixed_abs, tag = 'smem constant byte address 0x4 - core index']
  #allocation1 [shape = 'u32[144,128]{1,0:T(1,128)}', space=vmem, size = 0x12000, scoped, tag = 'internal scratch']
  %s0 = inlined_call_operand.vmem [shape: f32[4,8,160], index: 0, kind: input, shape index: {}]
  %s1 = inlined_call_operand.vmem [shape: bf16[160,64], index: 1, kind: input, shape index: {}]
  %s2 = inlined_call_operand.vmem [shape: bf16[192,16], index: 2, kind: input, shape index: {}]
  %s3 = inlined_call_operand.vmem [shape: bf16[16,64], index: 3, kind: input, shape index: {}]
  %s4 = inlined_call_operand.vmem [shape: bf16[128,32], index: 4, kind: input, shape index: {}]
  %s5 = inlined_call_operand.vmem [shape: f32[8,128], index: 5, kind: input, shape index: {}]
  %s6 = inlined_call_operand.hbm [shape: f32[2,2,32], index: 6, kind: output, shape index: {}]
  %s7 = sld [smem:[#allocation0]]
  $region57: #{tpu_custom_call.1} parent=0
    _
  %s9 = ssub.s32 1, %s7
  %s10 = scalar_select 0, %s9, %s7
  $region1: #{tpu_custom_call.1} parent=0
    #allocation2 [shape = 'u8[2048]{0}', space=vmem, size = 0x800, scoped, tag = 'output window, operand 0']
    #allocation3 [shape = 's32[2]{0}', space=sflag, size = 0x8, scoped, tag = 'scoped memory for tpu_custom_call.1']
    %11 = vsyncpa [#allocation3], 0
    %s12 = scalar_lea.sflag [#allocation3], 1
    %13 = vsyncpa %s12, 0
    loop: start=0, step=1, limit=4
    $region2: #{tpu_custom_call.1} parent=1 // loop_pre_header
      _
    $region3: #{tpu_custom_call.1} parent=1 // loop_header
      %s15 = sphi 0, %s19
      %p16 = scmp.ge.s32.totalorder %s15, 4
      %s25 = sphi 0, %s27
      %s28 = sphi 0, %s25
      %s29 = sphi 0, %s28
      %s45 = sphi 0, %s29
      %s49 = sphi 0, %s49
      %s51 = sphi 0, %s49
      %s52 = sphi 0, %s51
      %s66 = sphi 0, %s52
      %s70 = sphi 0, %s70
      %s72 = sphi 0, %s70
      %s73 = sphi 0, %s72
      %s87 = sphi 0, %s73
      %s91 = sphi 0, %s91
      %s93 = sphi 0, %s91
      %s94 = sphi 0, %s93
      %s108 = sphi 0, %s94
      %s112 = sphi 0, %s112
      %s114 = sphi 0, %s112
      %s115 = sphi 0, %s114
      %s129 = sphi 0, %s115
      %s133 = sphi 0, %s133
      %s135 = sphi 0, %s133
      %s136 = sphi 0, %s135
      %s150 = sphi 0, %s136
      %s156 = sphi 0, %s158
      %s159 = sphi 0, %s156
      %s160 = sphi 0, %s159
      %s176 = sphi 0, %s160
    $region4: #{tpu_custom_call.1} parent=1 // loop_header_branch
      %18 = sbr.rel (%p16) target = $region8
    $region5: #{tpu_custom_call.1} parent=1 // loop_body
      %s20 = ssub.s32 %s15, 1
      %s21 = ssub.s32 %s15, 2
      %s22 = sadd.s32 %s15, 1
      %s23 = ssub.s32 %s15, %s22
      %p24 = scmp.eq.s32.totalorder %s23, 0
      %s26 = sadd.s32 %s25, 1
      %s27 = scalar_select %p24, %s25, %s26
      %p30 = pneg %p24
      %p31 = scmp.eq.s32.totalorder %s15, 1
      %p32 = por %p30, %p31
      %p33 = scmp.ne.s32.totalorder %s25, %s28
      %p34 = scmp.eq.s32.totalorder %s15, 0
      %p35 = por %p33, %p34
      %p36 = scmp.ne.s32.totalorder %s25, %s28
      %p37 = scmp.eq.s32.totalorder %s20, 1
      %p38 = por %p36, %p37
      %p39 = scmp.ne.s32.totalorder %s28, %s29
      %p40 = scmp.eq.s32.totalorder %s20, 0
      %p41 = por %p39, %p40
      %p42 = scmp.ne.s32.totalorder %s28, %s29
      %p43 = scmp.eq.s32.totalorder %s21, 1
      %p44 = por %p42, %p43
      %p46 = scmp.ne.s32.totalorder %s29, %s45
      %p47 = scmp.eq.s32.totalorder %s21, 0
      %p48 = por %p46, %p47
      %s50 = sadd.s32 %s49, 1
      %p53 = scmp.eq.s32.totalorder %s15, 1
      %p54 = scmp.ne.s32.totalorder %s49, %s51
      %p55 = scmp.eq.s32.totalorder %s15, 0
      %p56 = por %p54, %p55
      %p57 = scmp.ne.s32.totalorder %s49, %s51
      %p58 = scmp.eq.s32.totalorder %s20, 1
      %p59 = por %p57, %p58
      %p60 = scmp.ne.s32.totalorder %s51, %s52
      %p61 = scmp.eq.s32.totalorder %s20, 0
      %p62 = por %p60, %p61
      %p63 = scmp.ne.s32.totalorder %s51, %s52
      %p64 = scmp.eq.s32.totalorder %s21, 1
      %p65 = por %p63, %p64
      %p67 = scmp.ne.s32.totalorder %s52, %s66
      %p68 = scmp.eq.s32.totalorder %s21, 0
      %p69 = por %p67, %p68
      %s71 = sadd.s32 %s70, 1
      %p74 = scmp.eq.s32.totalorder %s15, 1
      %p75 = scmp.ne.s32.totalorder %s70, %s72
      %p76 = scmp.eq.s32.totalorder %s15, 0
      %p77 = por %p75, %p76
      %p78 = scmp.ne.s32.totalorder %s70, %s72
      %p79 = scmp.eq.s32.totalorder %s20, 1
      %p80 = por %p78, %p79
      %p81 = scmp.ne.s32.totalorder %s72, %s73
      %p82 = scmp.eq.s32.totalorder %s20, 0
      %p83 = por %p81, %p82
      %p84 = scmp.ne.s32.totalorder %s72, %s73
      %p85 = scmp.eq.s32.totalorder %s21, 1
      %p86 = por %p84, %p85
      %p88 = scmp.ne.s32.totalorder %s73, %s87
      %p89 = scmp.eq.s32.totalorder %s21, 0
      %p90 = por %p88, %p89
      %s92 = sadd.s32 %s91, 1
      %p95 = scmp.eq.s32.totalorder %s15, 1
      %p96 = scmp.ne.s32.totalorder %s91, %s93
      %p97 = scmp.eq.s32.totalorder %s15, 0
      %p98 = por %p96, %p97
      %p99 = scmp.ne.s32.totalorder %s91, %s93
      %p100 = scmp.eq.s32.totalorder %s20, 1
      %p101 = por %p99, %p100
      %p102 = scmp.ne.s32.totalorder %s93, %s94
      %p103 = scmp.eq.s32.totalorder %s20, 0
      %p104 = por %p102, %p103
      %p105 = scmp.ne.s32.totalorder %s93, %s94
      %p106 = scmp.eq.s32.totalorder %s21, 1
      %p107 = por %p105, %p106
      %p109 = scmp.ne.s32.totalorder %s94, %s108
      %p110 = scmp.eq.s32.totalorder %s21, 0
      %p111 = por %p109, %p110
      %s113 = sadd.s32 %s112, 1
      %p116 = scmp.eq.s32.totalorder %s15, 1
      %p117 = scmp.ne.s32.totalorder %s112, %s114
      %p118 = scmp.eq.s32.totalorder %s15, 0
      %p119 = por %p117, %p118
      %p120 = scmp.ne.s32.totalorder %s112, %s114
      %p121 = scmp.eq.s32.totalorder %s20, 1
      %p122 = por %p120, %p121
      %p123 = scmp.ne.s32.totalorder %s114, %s115
      %p124 = scmp.eq.s32.totalorder %s20, 0
      %p125 = por %p123, %p124
      %p126 = scmp.ne.s32.totalorder %s114, %s115
      %p127 = scmp.eq.s32.totalorder %s21, 1
      %p128 = por %p126, %p127
      %p130 = scmp.ne.s32.totalorder %s115, %s129
      %p131 = scmp.eq.s32.totalorder %s21, 0
      %p132 = por %p130, %p131
      %s134 = sadd.s32 %s133, 1
      %p137 = scmp.eq.s32.totalorder %s15, 1
      %p138 = scmp.ne.s32.totalorder %s133, %s135
      %p139 = scmp.eq.s32.totalorder %s15, 0
      %p140 = por %p138, %p139
      %p141 = scmp.ne.s32.totalorder %s133, %s135
      %p142 = scmp.eq.s32.totalorder %s20, 1
      %p143 = por %p141, %p142
      %p144 = scmp.ne.s32.totalorder %s135, %s136
      %p145 = scmp.eq.s32.totalorder %s20, 0
      %p146 = por %p144, %p145
      %p147 = scmp.ne.s32.totalorder %s135, %s136
      %p148 = scmp.eq.s32.totalorder %s21, 1
      %p149 = por %p147, %p148
      %p151 = scmp.ne.s32.totalorder %s136, %s150
      %p152 = scmp.eq.s32.totalorder %s21, 0
      %p153 = por %p151, %p152
      %s154 = ssub.s32 %s15, %s22
      %p155 = scmp.eq.s32.totalorder %s154, 0
      %s157 = sadd.s32 %s156, 1
      %s158 = scalar_select %p155, %s156, %s157
      %p161 = pneg %p155
      %p162 = scmp.eq.s32.totalorder %s15, 1
      %p163 = por %p161, %p162
      %p164 = scmp.ne.s32.totalorder %s156, %s159
      %p165 = scmp.eq.s32.totalorder %s15, 0
      %p166 = por %p164, %p165
      %p167 = scmp.ne.s32.totalorder %s156, %s159
      %p168 = scmp.eq.s32.totalorder %s20, 1
      %p169 = por %p167, %p168
      %p170 = scmp.ne.s32.totalorder %s159, %s160
      %p171 = scmp.eq.s32.totalorder %s20, 0
      %p172 = por %p170, %p171
      %p173 = scmp.ne.s32.totalorder %s159, %s160
      %p174 = scmp.eq.s32.totalorder %s21, 1
      %p175 = por %p173, %p174
      %p177 = scmp.ne.s32.totalorder %s160, %s176
      %p178 = scmp.eq.s32.totalorder %s21, 0
      %p179 = por %p177, %p178
      %p180 = scmp.le.s32.totalorder 1, %s15
      %p181 = scmp.lt.s32.totalorder %s15, 3
      %p182 = pnand %p180, %p181
      %p183 = pneg %p182
      // Predicated region
      $region9: #{tpu_custom_call.1} parent=5 // pred_check
        _
      $region10: #{tpu_custom_call.1} parent=5 // pred_check_branch
        %185 = sbr.rel (%p182) target = $region12
      $region11: #{tpu_custom_call.1} parent=5 // pred_region
        %s186 = ssub.s32 %s15, 1
        // Predicated region
        $region13: #{tpu_custom_call.1} parent=11 // pred_check
          %p187 = pneg %p62
        $region14: #{tpu_custom_call.1} parent=11 // pred_check_branch
          %189 = sbr.rel (%p187) target = $region16
        $region15: #{tpu_custom_call.1} parent=11 // pred_region
          _
        $region16: #{tpu_custom_call.1} parent=11 // pred_fallthru
          _
        // Predicated region
        $region17: #{tpu_custom_call.1} parent=11 // pred_check
          %p190 = pneg %p83
        $region18: #{tpu_custom_call.1} parent=11 // pred_check_branch
          %192 = sbr.rel (%p190) target = $region20
        $region19: #{tpu_custom_call.1} parent=11 // pred_region
          _
        $region20: #{tpu_custom_call.1} parent=11 // pred_fallthru
          _
        // Predicated region
        $region21: #{tpu_custom_call.1} parent=11 // pred_check
          %p193 = pneg %p104
        $region22: #{tpu_custom_call.1} parent=11 // pred_check_branch
          %195 = sbr.rel (%p193) target = $region24
        $region23: #{tpu_custom_call.1} parent=11 // pred_region
          _
        $region24: #{tpu_custom_call.1} parent=11 // pred_fallthru
          _
        // Predicated region
        $region25: #{tpu_custom_call.1} parent=11 // pred_check
          %p196 = pneg %p125
        $region26: #{tpu_custom_call.1} parent=11 // pred_check_branch
          %198 = sbr.rel (%p196) target = $region28
        $region27: #{tpu_custom_call.1} parent=11 // pred_region
          _
        $region28: #{tpu_custom_call.1} parent=11 // pred_fallthru
          _
        // Predicated region
        $region29: #{tpu_custom_call.1} parent=11 // pred_check
          %p199 = pneg %p146
        $region30: #{tpu_custom_call.1} parent=11 // pred_check_branch
          %201 = sbr.rel (%p199) target = $region32
        $region31: #{tpu_custom_call.1} parent=11 // pred_region
          _
        $region32: #{tpu_custom_call.1} parent=11 // pred_fallthru
          _
      $region12: #{tpu_custom_call.1} parent=5 // pred_fallthru
        _
      %p202 = scmp.lt.s32.totalorder %s15, 2
      // Predicated region
      $region33: #{tpu_custom_call.1} parent=5 // pred_check
        %p203 = pneg %p202
      $region34: #{tpu_custom_call.1} parent=5 // pred_check_branch
        %205 = sbr.rel (%p203) target = $region36
      $region35: #{tpu_custom_call.1} parent=5 // pred_region
        // Predicated region
        $region37: #{tpu_custom_call.1} parent=35 // pred_check
          %p206 = pneg %p35
        $region38: #{tpu_custom_call.1} parent=35 // pred_check_branch
          %208 = sbr.rel (%p206) target = $region40
        $region39: #{tpu_custom_call.1} parent=35 // pred_region
          %s209 = smul.u32 2, %s15
          %p210 = scmp.lt.s32.totalorder %s209, 3
          %s211 = scalar_select %p210, %s209, 3
          %s212 = smul.addr %s211, 2
          %s213 = smul.addr %s212, 8
          %s214 = scalar_lea.vmem %s0, %s213
          %s215 = smul.u32 2, %s15
        $region40: #{tpu_custom_call.1} parent=35 // pred_fallthru
          _
      $region36: #{tpu_custom_call.1} parent=5 // pred_fallthru
        _
      %p216 = scmp.le.s32.totalorder 1, %s15
      %p217 = scmp.lt.s32.totalorder %s15, 3
      %p218 = pnand %p216, %p217
      %p219 = pneg %p218
      // Predicated region
      $region41: #{tpu_custom_call.1} parent=5 // pred_check
        _
      $region42: #{tpu_custom_call.1} parent=5 // pred_check_branch
        %221 = sbr.rel (%p218) target = $region44
      $region43: #{tpu_custom_call.1} parent=5 // pred_region
        %s222 = ssub.s32 %s15, 1
        %s223 = smul.u32 2, %s20
        %p224 = scmp.lt.s32.totalorder %s223, 3
        %s225 = scalar_select %p224, %s223, 3
        %s226 = smul.addr %s225, 2
        %s227 = smul.addr %s226, 8
        %s228 = scalar_lea.vmem %s0, %s227
        %p229 = pneg %p41
        %p230 = pneg %p38
        %p231 = pneg %p62
        %p232 = pneg %p59
        %p233 = pneg %p83
        %p234 = pneg %p80
        %p235 = pneg %p104
        %p236 = pneg %p101
        %p237 = pneg %p125
        %p238 = pneg %p122
        %p239 = pneg %p146
        %p240 = pneg %p143
        %p241 = pneg %p172
        %p242 = pneg %p169
        %s243 = sand.u32 %s159, 1
        %s244 = scalar_lea.sflag [#allocation3], %s243
        %s245 = sand.u32 %s159, 1
        %s246 = smul.addr %s245, 2
        %s247 = scalar_lea.vmem [#allocation2], %s246
        %s248 = smul.u32 2, %s20
        %p249 = scmp.lt.s32.totalorder %s248, 3
        %s250 = scalar_select %p249, %s248, 3
        %s251 = smul.addr %s250, 2
        %s252 = smul.addr %s251, 8
        %s253 = scalar_lea.vmem %s0, %s252
        %s254 = smul.u32 2, %s20
        %v256 = vld [vmem:[%s5] sm:$0x1]
        %v257 = vld [vmem:[%s5 + $0x1] sm:$0x1]
        %v258 = vld [vmem:[%s5 + $0x2] sm:$0x1]
        %v259 = vld [vmem:[%s5 + $0x3] sm:$0x1]
        %v260 = vld [vmem:[%s5 + $0x4] sm:$0x1]
        %v261 = vld [vmem:[%s5 + $0x5] sm:$0x1]
        %v262 = vld [vmem:[%s253] sm:$0xff]
        %v263 = vld [vmem:[%s253 + $0x8] sm:$0xff]
        %v264 = vld [vmem:[%s253 + $0x10] sm:$0xff]
        %v265 = vld [vmem:[%s253 + $0x18] sm:$0xff]
        %v266 = vpack.c.bf16 %v262, %v262
        %v267 = vpack.c.bf16 %v263, %v263
        %v268 = vpack.c.bf16 %v264, %v264
        %v269 = vpack.c.bf16 %v265, %v265
        %v274 = vunpack.c.l.b16 %v266
        %v275 = vunpack.c.l.b16 %v267
        %v276 = vunpack.c.l.b16 %v268
        %v277 = vunpack.c.l.b16 %v269
        %v278 = vld [vmem:[%s1] sm:$0xf]
        %v279 = vld [vmem:[%s1 + $0x4] sm:$0xf]
        %v280 = vld [vmem:[%s1 + $0x8] sm:$0xf]
        %v281 = vld [vmem:[%s1 + $0xc] sm:$0xf]
        %v282 = vld [vmem:[%s1 + $0x10] sm:$0xf]
        %v283 = vld [vmem:[%s1 + $0x14] sm:$0xf]
        %v284 = vld [vmem:[%s1 + $0x18] sm:$0xf]
        %v285 = vld [vmem:[%s1 + $0x1c] sm:$0xf]
        %v286 = vld [vmem:[%s1 + $0x20] sm:$0xf]
        %v287 = vld [vmem:[%s1 + $0x24] sm:$0xf]
        %v288 = vld [vmem:[%s1 + $0x28] sm:$0xf]
        %v289 = vld [vmem:[%s1 + $0x2c] sm:$0xf]
        %v290 = vld [vmem:[%s1 + $0x30] sm:$0xf]
        %v291 = vld [vmem:[%s1 + $0x34] sm:$0xf]
        %v292 = vld [vmem:[%s1 + $0x38] sm:$0xf]
        %v293 = vld [vmem:[%s1 + $0x3c] sm:$0xf]
        %v294 = vld [vmem:[%s1 + $0x40] sm:$0xf]
        %v295 = vld [vmem:[%s1 + $0x44] sm:$0xf]
        %v296 = vld [vmem:[%s1 + $0x48] sm:$0xf]
        %v297 = vld [vmem:[%s1 + $0x4c] sm:$0xf]
        %v298 = vlaneseq
        %v299 = vshrl.u32 %v298, 7
        %v300 = vsub.s32 0, %v299
        %v301 = vrot.slane %v256, %v300
        %v302 = vpack.c.b16 %v276, %v274
        %v303 = vpack.c.b16 %v277, %v275
        %v325 = vunpack.c.l.b16 %v278
        %v326 = vunpack.c.l.b16 %v279
        %v327 = vunpack.c.l.b16 %v280
        %v328 = vunpack.c.l.b16 %v281
        %v329 = vunpack.c.l.b16 %v282
        %v330 = vunpack.c.l.b16 %v283
        %v331 = vunpack.c.l.b16 %v284
        %v332 = vunpack.c.l.b16 %v285
        %v333 = vunpack.c.l.b16 %v286
        %v334 = vunpack.c.l.b16 %v287
        %v335 = vunpack.c.l.b16 %v288
        %v336 = vunpack.c.l.b16 %v289
        %v337 = vunpack.c.l.b16 %v290
        %v338 = vunpack.c.l.b16 %v291
        %v339 = vunpack.c.l.b16 %v292
        %v340 = vunpack.c.l.b16 %v293
        %v341 = vunpack.c.l.b16 %v294
        %v342 = vunpack.c.l.b16 %v295
        %v343 = vunpack.c.l.b16 %v296
        %v344 = vunpack.c.l.b16 %v297
        %v345 = vpack.c.b16 %v326, %v325
        %v346 = vpack.c.b16 %v328, %v327
        %v347 = vpack.c.b16 %v330, %v329
        %v348 = vpack.c.b16 %v332, %v331
        %v349 = vpack.c.b16 %v334, %v333
        %v350 = vpack.c.b16 %v336, %v335
        %v351 = vpack.c.b16 %v338, %v337
        %v352 = vpack.c.b16 %v340, %v339
        %v353 = vpack.c.b16 %v342, %v341
        %v354 = vpack.c.b16 %v344, %v343
        %vm365 = vcmask 261120
        %v367 = vsel %vm365, %v303, 0
        %369 = vmatprep.subr.bf16.mxu0 0
        %370 = vmatpush1.bf16.msra.mxu0 %v345
        %371 = vmatprep.subr.bf16.mxu0 0
        %372 = vmatpush1.bf16.msra.mxu0 %v346
        %373 = vmatprep.subr.bf16.mxu0 0
        %374 = vmatpush1.bf16.msra.mxu0 %v347
        %375 = vmatprep.subr.bf16.mxu0 0
        %376 = vmatpush1.bf16.msra.mxu0 %v348
        %377 = vmatprep.subr.bf16.mxu0 0
        %378 = vmatpush1.bf16.msra.mxu0 %v349
        %379 = vmatprep.subr.bf16.mxu0 0
        %380 = vmatpush1.bf16.msra.mxu0 %v350
        %381 = vmatprep.subr.bf16.mxu0 0
        %382 = vmatpush1.bf16.msra.mxu0 %v351
        %383 = vmatprep.subr.bf16.mxu0 0
        %384 = vmatpush1.bf16.msra.mxu0 %v352
        %385 = vmatprep.subr.bf16.mxu0 0
        %386 = vmatpush1.bf16.msra.mxu0 %v353
        %387 = vmatprep.subr.bf16.mxu0 0
        %388 = vmatpush1.bf16.msra.mxu0 %v354
        %389 = vmatprep.subr.bf16.mxu0 0
        %390 = vmatpush1.bf16.msra.mxu0 0
        %391 = vmatprep.subr.bf16.mxu0 0
        %392 = vmatpush1.bf16.msra.mxu0 0
        %393 = vmatprep.subr.bf16.mxu0 0
        %394 = vmatpush1.bf16.msra.mxu0 0
        %395 = vmatprep.subr.bf16.mxu0 0
        %396 = vmatpush1.bf16.msra.mxu0 0
        %397 = vmatprep.subr.bf16.mxu0 0
        %398 = vmatpush1.bf16.msra.mxu0 0
        %399 = vmatprep.subr.bf16.mxu0 0
        %400 = vmatpush1.bf16.msra.mxu0 0
        %401 = vmatprep.mubr.bf16.mxu0 %v367
        %402 = vmatmul.mubr.bf16.gmra.mrb[0].mxu0 %v302
        %v403 = vpop.f32.mrb[0].mxu0
        %v404 = vadd.f32 %v301, %v403
        %v405 = vpop.f32.mrb[0].mxu0
        %v406 = vpop.f32.mrb[0].mxu0
        %v407 = vadd.f32 %v301, %v406
        %v408 = vpop.f32.mrb[0].mxu0
        %409 = vdwg.mxu0
        %vm410 = vcmask 523264
        %v411 = vsel %vm410, %v404, 0.0
        %v412 = vrot.slane %v411, 4
        %v413 = vadd.f32 %v411, %v412
        %v414 = vrot.slane %v413, 2
        %v415 = vadd.f32 %v413, %v414
        %v416 = vrot.slane %v415, 1
        %v417 = vadd.f32 %v415, %v416
        %v418 = vsel %vm410, %v407, 0.0
        %v419 = vrot.slane %v418, 4
        %v420 = vadd.f32 %v418, %v419
        %v421 = vrot.slane %v420, 2
        %v422 = vadd.f32 %v420, %v421
        %v423 = vrot.slane %v422, 1
        %v424 = vadd.f32 %v422, %v423
        %v425 = vrcp.pop 8.0
        %v426 = vmul.f32 %v417, %v425
        %v427 = vmul.f32 %v424, %v425
        %v428 = vmul.f32 %v404, %v404
        %v429 = vmul.f32 %v407, %v407
        %v430 = vsel %vm410, %v428, 0.0
        %v431 = vrot.slane %v430, 4
        %v432 = vadd.f32 %v430, %v431
        %v433 = vrot.slane %v432, 2
        %v434 = vadd.f32 %v432, %v433
        %v435 = vrot.slane %v434, 1
        %v436 = vadd.f32 %v434, %v435
        %v437 = vsel %vm410, %v429, 0.0
        %v438 = vrot.slane %v437, 4
        %v439 = vadd.f32 %v437, %v438
        %v440 = vrot.slane %v439, 2
        %v441 = vadd.f32 %v439, %v440
        %v442 = vrot.slane %v441, 1
        %v443 = vadd.f32 %v441, %v442
        %v444 = vmul.f32 %v436, %v425
        %v445 = vmul.f32 %v443, %v425
        %v446 = vmul.f32 %v426, %v426
        %v447 = vmul.f32 %v427, %v427
        %v448 = vsub.f32 %v444, %v446
        %v449 = vsub.f32 %v445, %v447
        %v450 = vmax.f32 %v448, 1e-12
        %v451 = vmax.f32 %v449, 1e-12
        %v452 = vrsqrt.pop %v450
        %v453 = vmul.f32 %v450, %v452
        %vm454 = vcmp.eq.f32.partialorder %v450, inf
        %v455 = vsel %vm454, %v450, %v453
        %vm456 = vcmp.eq.f32.partialorder %v450, 0.0
        %v457 = vand.u32 %v450, 2147483648
        %v458 = vsel %vm456, %v457, %v455
        %v459 = vrsqrt.pop %v451
        %v460 = vmul.f32 %v451, %v459
        %vm461 = vcmp.eq.f32.partialorder %v451, inf
        %v462 = vsel %vm461, %v451, %v460
        %vm463 = vcmp.eq.f32.partialorder %v451, 0.0
        %v464 = vand.u32 %v451, 2147483648
        %v465 = vsel %vm463, %v464, %v462
        %v466 = vld [vmem:[%s2] sm:$0xf]
        %v467 = vld [vmem:[%s2 + $0x4] sm:$0xf]
        %v468 = vld [vmem:[%s2 + $0x8] sm:$0xf]
        %v469 = vld [vmem:[%s2 + $0xc] sm:$0xf]
        %v470 = vld [vmem:[%s2 + $0x10] sm:$0xf]
        %v471 = vld [vmem:[%s2 + $0x14] sm:$0xf]
        %v472 = vld [vmem:[%s2 + $0x18] sm:$0xf]
        %v473 = vld [vmem:[%s2 + $0x1c] sm:$0xf]
        %v474 = vld [vmem:[%s2 + $0x20] sm:$0xf]
        %v475 = vld [vmem:[%s2 + $0x24] sm:$0xf]
        %v476 = vld [vmem:[%s2 + $0x28] sm:$0xf]
        %v477 = vld [vmem:[%s2 + $0x2c] sm:$0xf]
        %v478 = vld [vmem:[%s2 + $0x30] sm:$0xf]
        %v479 = vld [vmem:[%s2 + $0x34] sm:$0xf]
        %v480 = vld [vmem:[%s2 + $0x38] sm:$0xf]
        %v481 = vld [vmem:[%s2 + $0x3c] sm:$0xf]
        %v482 = vld [vmem:[%s2 + $0x40] sm:$0xf]
        %v483 = vld [vmem:[%s2 + $0x44] sm:$0xf]
        %v484 = vld [vmem:[%s2 + $0x48] sm:$0xf]
        %v485 = vld [vmem:[%s2 + $0x4c] sm:$0xf]
        %v486 = vld [vmem:[%s2 + $0x50] sm:$0xf]
        %v487 = vld [vmem:[%s2 + $0x54] sm:$0xf]
        %v488 = vld [vmem:[%s2 + $0x58] sm:$0xf]
        %v489 = vld [vmem:[%s2 + $0x5c] sm:$0xf]
        %v490 = vpack.c.bf16 %v407, %v404
        %v499 = vunpack.c.l.b16 %v466
        %v500 = vunpack.c.l.b16 %v467
        %v501 = vunpack.c.l.b16 %v468
        %v502 = vunpack.c.l.b16 %v469
        %v503 = vunpack.c.l.b16 %v470
        %v504 = vunpack.c.l.b16 %v471
        %v505 = vunpack.c.l.b16 %v472
        %v506 = vunpack.c.l.b16 %v473
        %v507 = vpack.c.b16 %v500, %v499
        %v508 = vpack.c.b16 %v502, %v501
        %v509 = vpack.c.b16 %v504, %v503
        %v510 = vpack.c.b16 %v506, %v505
        %v516 = vsel %vm410, %v490, 0
        %518 = vmatprep.subr.bf16.mxu0 0
        %519 = vmatpush1.bf16.msra.mxu0 %v507
        %520 = vmatprep.subr.bf16.mxu0 0
        %521 = vmatpush1.bf16.msra.mxu0 %v508
        %522 = vmatprep.subr.bf16.mxu0 0
        %523 = vmatpush1.bf16.msra.mxu0 %v509
        %524 = vmatprep.subr.bf16.mxu0 0
        %525 = vmatpush1.bf16.msra.mxu0 %v510
        %526 = vmatprep.subr.bf16.mxu0 0
        %527 = vmatpush1.bf16.msra.mxu0 0
        %528 = vmatprep.subr.bf16.mxu0 0
        %529 = vmatpush1.bf16.msra.mxu0 0
        %530 = vmatprep.subr.bf16.mxu0 0
        %531 = vmatpush1.bf16.msra.mxu0 0
        %532 = vmatprep.subr.bf16.mxu0 0
        %533 = vmatpush1.bf16.msra.mxu0 0
        %534 = vmatprep.subr.bf16.mxu0 0
        %535 = vmatpush1.bf16.msra.mxu0 0
        %536 = vmatprep.subr.bf16.mxu0 0
        %537 = vmatpush1.bf16.msra.mxu0 0
        %538 = vmatprep.subr.bf16.mxu0 0
        %539 = vmatpush1.bf16.msra.mxu0 0
        %540 = vmatprep.subr.bf16.mxu0 0
        %541 = vmatpush1.bf16.msra.mxu0 0
        %542 = vmatprep.subr.bf16.mxu0 0
        %543 = vmatpush1.bf16.msra.mxu0 0
        %544 = vmatprep.subr.bf16.mxu0 0
        %545 = vmatpush1.bf16.msra.mxu0 0
        %546 = vmatprep.subr.bf16.mxu0 0
        %547 = vmatpush1.bf16.msra.mxu0 0
        %548 = vmatprep.subr.bf16.mxu0 0
        %549 = vmatpush1.bf16.msra.mxu0 0
        %550 = vmatprep.mubr.bf16.mxu0 0
        %551 = vmatmul.mubr.bf16.gmra.mrb[0].mxu0 %v516
        %v552 = vpop.f32.mrb[0].mxu0
        %v553 = vadd.f32 0.0, %v552
        %v554 = vpop.f32.mrb[0].mxu0
        %v555 = vpop.f32.mrb[0].mxu0
        %v556 = vadd.f32 0.0, %v555
        %v557 = vpop.f32.mrb[0].mxu0
        %558 = vdwg.mxu0
        %v559 = vpack.c.bf16 %v426, %v426
        %v560 = vpack.c.bf16 %v427, %v427
        %v561 = vpack.c.bf16 %v458, %v458
        %v562 = vpack.c.bf16 %v465, %v465
        %v565 = vunpack.c.l.b16 %v561
        %v566 = vunpack.c.l.b16 %v562
        %vm567 = vcmask 1041409
        %v568 = vsel %vm567, %v566, %v565
        %v569 = vpack.c.b16 %v568, %v568
        %v578 = vunpack.c.l.b16 %v482
        %v579 = vunpack.c.l.b16 %v483
        %v580 = vunpack.c.l.b16 %v484
        %v581 = vunpack.c.l.b16 %v485
        %v582 = vunpack.c.l.b16 %v486
        %v583 = vunpack.c.l.b16 %v487
        %v584 = vunpack.c.l.b16 %v488
        %v585 = vunpack.c.l.b16 %v489
        %v586 = vpack.c.b16 %v579, %v578
        %v587 = vpack.c.b16 %v581, %v580
        %v588 = vpack.c.b16 %v583, %v582
        %v589 = vpack.c.b16 %v585, %v584
        %v595 = vsel %vm410, %v569, 0
        %597 = vmatprep.subr.bf16.mxu0 0
        %598 = vmatpush1.bf16.msra.mxu0 %v586
        %599 = vmatprep.subr.bf16.mxu0 0
        %600 = vmatpush1.bf16.msra.mxu0 %v587
        %601 = vmatprep.subr.bf16.mxu0 0
        %602 = vmatpush1.bf16.msra.mxu0 %v588
        %603 = vmatprep.subr.bf16.mxu0 0
        %604 = vmatpush1.bf16.msra.mxu0 %v589
        %605 = vmatprep.subr.bf16.mxu0 0
        %606 = vmatpush1.bf16.msra.mxu0 0
        %607 = vmatprep.subr.bf16.mxu0 0
        %608 = vmatpush1.bf16.msra.mxu0 0
        %609 = vmatprep.subr.bf16.mxu0 0
        %610 = vmatpush1.bf16.msra.mxu0 0
        %611 = vmatprep.subr.bf16.mxu0 0
        %612 = vmatpush1.bf16.msra.mxu0 0
        %613 = vmatprep.subr.bf16.mxu0 0
        %614 = vmatpush1.bf16.msra.mxu0 0
        %615 = vmatprep.subr.bf16.mxu0 0
        %616 = vmatpush1.bf16.msra.mxu0 0
        %617 = vmatprep.subr.bf16.mxu0 0
        %618 = vmatpush1.bf16.msra.mxu0 0
        %619 = vmatprep.subr.bf16.mxu0 0
        %620 = vmatpush1.bf16.msra.mxu0 0
        %621 = vmatprep.subr.bf16.mxu0 0
        %622 = vmatpush1.bf16.msra.mxu0 0
        %623 = vmatprep.subr.bf16.mxu0 0
        %624 = vmatpush1.bf16.msra.mxu0 0
        %625 = vmatprep.subr.bf16.mxu0 0
        %626 = vmatpush1.bf16.msra.mxu0 0
        %627 = vmatprep.subr.bf16.mxu0 0
        %628 = vmatpush1.bf16.msra.mxu0 0
        %629 = vmatprep.mubr.bf16.mxu0 0
        %630 = vmatmul.mubr.bf16.gmra.mrb[0].mxu0 %v595
        %v631 = vpop.f32.mrb[0].mxu0
        %v632 = vadd.f32 0.0, %v631
        %v633 = vpop.f32.mrb[0].mxu0
        %v634 = vpop.f32.mrb[0].mxu0
        %v635 = vpop.f32.mrb[0].mxu0
        %636 = vdwg.mxu0
        %v639 = vunpack.c.l.b16 %v559
        %v640 = vunpack.c.l.b16 %v560
        %v641 = vsel %vm567, %v640, %v639
        %v642 = vpack.c.b16 %v641, %v641
        %v651 = vunpack.c.l.b16 %v474
        %v652 = vunpack.c.l.b16 %v475
        %v653 = vunpack.c.l.b16 %v476
        %v654 = vunpack.c.l.b16 %v477
        %v655 = vunpack.c.l.b16 %v478
        %v656 = vunpack.c.l.b16 %v479
        %v657 = vunpack.c.l.b16 %v480
        %v658 = vunpack.c.l.b16 %v481
        %v659 = vpack.c.b16 %v652, %v651
        %v660 = vpack.c.b16 %v654, %v653
        %v661 = vpack.c.b16 %v656, %v655
        %v662 = vpack.c.b16 %v658, %v657
        %v668 = vsel %vm410, %v642, 0
        %670 = vmatprep.subr.bf16.mxu0 0
        %671 = vmatpush1.bf16.msra.mxu0 %v659
        %672 = vmatprep.subr.bf16.mxu0 0
        %673 = vmatpush1.bf16.msra.mxu0 %v660
        %674 = vmatprep.subr.bf16.mxu0 0
        %675 = vmatpush1.bf16.msra.mxu0 %v661
        %676 = vmatprep.subr.bf16.mxu0 0
        %677 = vmatpush1.bf16.msra.mxu0 %v662
        %678 = vmatprep.subr.bf16.mxu0 0
        %679 = vmatpush1.bf16.msra.mxu0 0
        %680 = vmatprep.subr.bf16.mxu0 0
        %681 = vmatpush1.bf16.msra.mxu0 0
        %682 = vmatprep.subr.bf16.mxu0 0
        %683 = vmatpush1.bf16.msra.mxu0 0
        %684 = vmatprep.subr.bf16.mxu0 0
        %685 = vmatpush1.bf16.msra.mxu0 0
        %686 = vmatprep.subr.bf16.mxu0 0
        %687 = vmatpush1.bf16.msra.mxu0 0
        %688 = vmatprep.subr.bf16.mxu0 0
        %689 = vmatpush1.bf16.msra.mxu0 0
        %690 = vmatprep.subr.bf16.mxu0 0
        %691 = vmatpush1.bf16.msra.mxu0 0
        %692 = vmatprep.subr.bf16.mxu0 0
        %693 = vmatpush1.bf16.msra.mxu0 0
        %694 = vmatprep.subr.bf16.mxu0 0
        %695 = vmatpush1.bf16.msra.mxu0 0
        %696 = vmatprep.subr.bf16.mxu0 0
        %697 = vmatpush1.bf16.msra.mxu0 0
        %698 = vmatprep.subr.bf16.mxu0 0
        %699 = vmatpush1.bf16.msra.mxu0 0
        %700 = vmatprep.subr.bf16.mxu0 0
        %701 = vmatpush1.bf16.msra.mxu0 0
        %702 = vmatprep.mubr.bf16.mxu0 0
        %703 = vmatmul.mubr.bf16.gmra.mrb[0].mxu0 %v668
        %v704 = vpop.f32.mrb[0].mxu0
        %v705 = vadd.f32 %v632, %v704
        %v706 = vpop.f32.mrb[0].mxu0
        %v707 = vpop.f32.mrb[0].mxu0
        %v708 = vpop.f32.mrb[0].mxu0
        %709 = vdwg.mxu0
        %v710 = vlaneseq
        %v711 = vshrl.u32 %v710, 7
        %v712 = vsub.s32 0, %v711
        %v713 = vrot.slane %v257, %v712
        %v714 = vadd.f32 %v705, %v713
        %v717 = vunpack.c.l.s4 1966171168
        %v718 = vunpack.c.0.s8 %v717
        %v719 = vlaneseq
        %v720 = vshrl.u32 %v719, 7
        %v721 = vsub.s32 %v718, %v720
        %v722 = vrot.slane %v714, %v721
        %v723 = vcombine.high %v722, %v722
        %v725 = vunpack.c.l.s4 1966171168
        %v726 = vunpack.c.0.s8 %v725
        %v727 = vlaneseq
        %v728 = vshrl.u32 %v727, 7
        %v729 = vsub.s32 %v726, %v728
        %v730 = vrot.slane %v722, %v729
        %v732 = vunpack.c.l.s4 1966171168
        %v733 = vunpack.c.0.s8 %v732
        %v734 = vlaneseq
        %v735 = vshrl.u32 %v734, 7
        %v736 = vsub.s32 %v733, %v735
        %v737 = vrot.slane %v723, %v736
        %v738 = vlaneseq
        %v739 = vshrl.u32 %v738, 7
        %v740 = vsub.s32 0, %v739
        %v741 = vrot.slane %v730, %v740
        %v742 = vlaneseq
        %v743 = vshrl.u32 %v742, 7
        %v744 = vsub.s32 0, %v743
        %v745 = vrot.slane %v737, %v744
        %v748 = vadd.f32 %v553, %v741
        %v749 = vadd.f32 %v556, %v745
        %v750 = vmax.f32 %v748, 0.0
        %v751 = vmax.f32 %v749, 0.0
        %v752 = vlaneseq
        %v753 = vshrl.u32 %v752, 7
        %v754 = vsub.s32 0, %v753
        %v755 = vrot.slane %v258, %v754
        %v756 = vmul.f32 %v750, %v755
        %v757 = vmul.f32 %v751, %v755
        %v758 = vlaneseq
        %v759 = vshrl.u32 %v758, 7
        %v760 = vsub.s32 0, %v759
        %v761 = vrot.slane %v259, %v760
        %v762 = vadd.f32 %v756, %v761
        %v763 = vadd.f32 %v757, %v761
        %v764 = vtanh.pop %v762
        %v765 = vtanh.pop %v763
        %v766 = vpack.c.bf16 %v765, %v764
        %v767 = vld [vmem:[%s3] sm:$0xf]
        %v768 = vld [vmem:[%s3 + $0x4] sm:$0xf]
        %v769 = vlaneseq
        %v770 = vshrl.u32 %v769, 7
        %v771 = vsub.s32 0, %v770
        %v772 = vrot.slane %v260, %v771
        %v775 = vunpack.c.l.b16 %v767
        %v776 = vunpack.c.l.b16 %v768
        %v777 = vpack.c.b16 %v776, %v775
        %vm779 = vcmask 130048
        %v781 = vsel %vm779, %v766, 0
        %783 = vmatprep.subr.bf16.mxu0 0
        %784 = vmatpush1.bf16.msra.mxu0 %v777
        %785 = vmatprep.subr.bf16.mxu0 0
        %786 = vmatpush1.bf16.msra.mxu0 0
        %787 = vmatprep.subr.bf16.mxu0 0
        %788 = vmatpush1.bf16.msra.mxu0 0
        %789 = vmatprep.subr.bf16.mxu0 0
        %790 = vmatpush1.bf16.msra.mxu0 0
        %791 = vmatprep.subr.bf16.mxu0 0
        %792 = vmatpush1.bf16.msra.mxu0 0
        %793 = vmatprep.subr.bf16.mxu0 0
        %794 = vmatpush1.bf16.msra.mxu0 0
        %795 = vmatprep.subr.bf16.mxu0 0
        %796 = vmatpush1.bf16.msra.mxu0 0
        %797 = vmatprep.subr.bf16.mxu0 0
        %798 = vmatpush1.bf16.msra.mxu0 0
        %799 = vmatprep.subr.bf16.mxu0 0
        %800 = vmatpush1.bf16.msra.mxu0 0
        %801 = vmatprep.subr.bf16.mxu0 0
        %802 = vmatpush1.bf16.msra.mxu0 0
        %803 = vmatprep.subr.bf16.mxu0 0
        %804 = vmatpush1.bf16.msra.mxu0 0
        %805 = vmatprep.subr.bf16.mxu0 0
        %806 = vmatpush1.bf16.msra.mxu0 0
        %807 = vmatprep.subr.bf16.mxu0 0
        %808 = vmatpush1.bf16.msra.mxu0 0
        %809 = vmatprep.subr.bf16.mxu0 0
        %810 = vmatpush1.bf16.msra.mxu0 0
        %811 = vmatprep.subr.bf16.mxu0 0
        %812 = vmatpush1.bf16.msra.mxu0 0
        %813 = vmatprep.subr.bf16.mxu0 0
        %814 = vmatpush1.bf16.msra.mxu0 0
        %815 = vmatprep.mubr.bf16.mxu0 0
        %816 = vmatmul.mubr.bf16.gmra.mrb[0].mxu0 %v781
        %v817 = vpop.f32.mrb[0].mxu0
        %v818 = vadd.f32 %v772, %v817
        %v819 = vpop.f32.mrb[0].mxu0
        %v820 = vpop.f32.mrb[0].mxu0
        %v821 = vadd.f32 %v772, %v820
        %v822 = vpop.f32.mrb[0].mxu0
        %823 = vdwg.mxu0
        %v824 = vsel %vm410, %v818, -inf
        %v825 = vrot.slane %v824, 4
        %v826 = vmax.f32 %v824, %v825
        %v827 = vrot.slane %v826, 2
        %v828 = vmax.f32 %v826, %v827
        %v829 = vrot.slane %v828, 1
        %v830 = vmax.f32 %v828, %v829
        %v831 = vsel %vm410, %v821, -inf
        %v832 = vrot.slane %v831, 4
        %v833 = vmax.f32 %v831, %v832
        %v834 = vrot.slane %v833, 2
        %v835 = vmax.f32 %v833, %v834
        %v836 = vrot.slane %v835, 1
        %v837 = vmax.f32 %v835, %v836
        %v838 = vsub.f32 %v818, %v830
        %v839 = vsub.f32 %v821, %v837
        %v840 = vmul.f32 %v838, 1.442695
        %v841 = vpow.pop %v840
        %v842 = vmul.f32 %v839, 1.442695
        %v843 = vpow.pop %v842
        %v844 = vsel %vm410, %v841, 0.0
        %v845 = vrot.slane %v844, 4
        %v846 = vadd.f32 %v844, %v845
        %v847 = vrot.slane %v846, 2
        %v848 = vadd.f32 %v846, %v847
        %v849 = vrot.slane %v848, 1
        %v850 = vadd.f32 %v848, %v849
        %v851 = vsel %vm410, %v843, 0.0
        %v852 = vrot.slane %v851, 4
        %v853 = vadd.f32 %v851, %v852
        %v854 = vrot.slane %v853, 2
        %v855 = vadd.f32 %v853, %v854
        %v856 = vrot.slane %v855, 1
        %v857 = vadd.f32 %v855, %v856
        %v858 = vrcp.pop %v850
        %v859 = vmul.f32 %v841, %v858
        %v860 = vrcp.pop %v857
        %v861 = vmul.f32 %v843, %v860
        %v862 = vmul.f32 %v859, %v404
        %v863 = vmul.f32 %v861, %v407
        %v864 = vsel %vm410, %v862, 0.0
        %v865 = vrot.slane %v864, 4
        %v866 = vadd.f32 %v864, %v865
        %v867 = vrot.slane %v866, 2
        %v868 = vadd.f32 %v866, %v867
        %v869 = vrot.slane %v868, 1
        %v870 = vadd.f32 %v868, %v869
        %v871 = vsel %vm410, %v863, 0.0
        %v872 = vrot.slane %v871, 4
        %v873 = vadd.f32 %v871, %v872
        %v874 = vrot.slane %v873, 2
        %v875 = vadd.f32 %v873, %v874
        %v876 = vrot.slane %v875, 1
        %v877 = vadd.f32 %v875, %v876
        %v878 = vmul.f32 %v862, %v404
        %v879 = vmul.f32 %v863, %v407
        %v880 = vsel %vm410, %v878, 0.0
        %v881 = vrot.slane %v880, 4
        %v882 = vadd.f32 %v880, %v881
        %v883 = vrot.slane %v882, 2
        %v884 = vadd.f32 %v882, %v883
        %v885 = vrot.slane %v884, 1
        %v886 = vadd.f32 %v884, %v885
        %v887 = vsel %vm410, %v879, 0.0
        %v888 = vrot.slane %v887, 4
        %v889 = vadd.f32 %v887, %v888
        %v890 = vrot.slane %v889, 2
        %v891 = vadd.f32 %v889, %v890
        %v892 = vrot.slane %v891, 1
        %v893 = vadd.f32 %v891, %v892
        %v894 = vmul.f32 %v870, %v870
        %v895 = vmul.f32 %v877, %v877
        %v896 = vsub.f32 %v886, %v894
        %v897 = vsub.f32 %v893, %v895
        %v898 = vmax.f32 %v896, 1e-12
        %v899 = vmax.f32 %v897, 1e-12
        %v900 = vrsqrt.pop %v898
        %v901 = vmul.f32 %v898, %v900
        %vm902 = vcmp.eq.f32.partialorder %v898, inf
        %v903 = vsel %vm902, %v898, %v901
        %vm904 = vcmp.eq.f32.partialorder %v898, 0.0
        %v905 = vand.u32 %v898, 2147483648
        %v906 = vsel %vm904, %v905, %v903
        %v907 = vrsqrt.pop %v899
        %v908 = vmul.f32 %v899, %v907
        %vm909 = vcmp.eq.f32.partialorder %v899, inf
        %v910 = vsel %vm909, %v899, %v908
        %vm911 = vcmp.eq.f32.partialorder %v899, 0.0
        %v912 = vand.u32 %v899, 2147483648
        %v913 = vsel %vm911, %v912, %v910
        %v914 = vld [vmem:[%s4] sm:$0xf]
        %v915 = vld [vmem:[%s4 + $0x4] sm:$0xf]
        %v916 = vld [vmem:[%s4 + $0x8] sm:$0xf]
        %v917 = vld [vmem:[%s4 + $0xc] sm:$0xf]
        %v918 = vld [vmem:[%s4 + $0x10] sm:$0xf]
        %v919 = vld [vmem:[%s4 + $0x14] sm:$0xf]
        %v920 = vld [vmem:[%s4 + $0x18] sm:$0xf]
        %v921 = vld [vmem:[%s4 + $0x1c] sm:$0xf]
        %v922 = vld [vmem:[%s4 + $0x20] sm:$0xf]
        %v923 = vld [vmem:[%s4 + $0x24] sm:$0xf]
        %v924 = vld [vmem:[%s4 + $0x28] sm:$0xf]
        %v925 = vld [vmem:[%s4 + $0x2c] sm:$0xf]
        %v926 = vld [vmem:[%s4 + $0x30] sm:$0xf]
        %v927 = vld [vmem:[%s4 + $0x34] sm:$0xf]
        %v928 = vld [vmem:[%s4 + $0x38] sm:$0xf]
        %v929 = vld [vmem:[%s4 + $0x3c] sm:$0xf]
        %v930 = vpack.c.bf16 %v870, %v870
        %v931 = vpack.c.bf16 %v877, %v877
        %v932 = vpack.c.bf16 %v906, %v906
        %v933 = vpack.c.bf16 %v913, %v913
        %v936 = vunpack.c.l.b16 %v932
        %v937 = vunpack.c.l.b16 %v933
        %v938 = vsel %vm567, %v937, %v936
        %v939 = vpack.c.b16 %v938, %v938
        %v948 = vunpack.c.l.b16 %v922
        %v949 = vunpack.c.l.b16 %v923
        %v950 = vunpack.c.l.b16 %v924
        %v951 = vunpack.c.l.b16 %v925
        %v952 = vunpack.c.l.b16 %v926
        %v953 = vunpack.c.l.b16 %v927
        %v954 = vunpack.c.l.b16 %v928
        %v955 = vunpack.c.l.b16 %v929
        %v956 = vpack.c.b16 %v949, %v948
        %v957 = vpack.c.b16 %v951, %v950
        %v958 = vpack.c.b16 %v953, %v952
        %v959 = vpack.c.b16 %v955, %v954
        %v965 = vsel %vm410, %v939, 0
        %967 = vmatprep.subr.bf16.mxu0 0
        %968 = vmatpush1.bf16.msra.mxu0 %v956
        %969 = vmatprep.subr.bf16.mxu0 0
        %970 = vmatpush1.bf16.msra.mxu0 %v957
        %971 = vmatprep.subr.bf16.mxu0 0
        %972 = vmatpush1.bf16.msra.mxu0 %v958
        %973 = vmatprep.subr.bf16.mxu0 0
        %974 = vmatpush1.bf16.msra.mxu0 %v959
        %975 = vmatprep.subr.bf16.mxu0 0
        %976 = vmatpush1.bf16.msra.mxu0 0
        %977 = vmatprep.subr.bf16.mxu0 0
        %978 = vmatpush1.bf16.msra.mxu0 0
        %979 = vmatprep.subr.bf16.mxu0 0
        %980 = vmatpush1.bf16.msra.mxu0 0
        %981 = vmatprep.subr.bf16.mxu0 0
        %982 = vmatpush1.bf16.msra.mxu0 0
        %983 = vmatprep.subr.bf16.mxu0 0
        %984 = vmatpush1.bf16.msra.mxu0 0
        %985 = vmatprep.subr.bf16.mxu0 0
        %986 = vmatpush1.bf16.msra.mxu0 0
        %987 = vmatprep.subr.bf16.mxu0 0
        %988 = vmatpush1.bf16.msra.mxu0 0
        %989 = vmatprep.subr.bf16.mxu0 0
        %990 = vmatpush1.bf16.msra.mxu0 0
        %991 = vmatprep.subr.bf16.mxu0 0
        %992 = vmatpush1.bf16.msra.mxu0 0
        %993 = vmatprep.subr.bf16.mxu0 0
        %994 = vmatpush1.bf16.msra.mxu0 0
        %995 = vmatprep.subr.bf16.mxu0 0
        %996 = vmatpush1.bf16.msra.mxu0 0
        %997 = vmatprep.subr.bf16.mxu0 0
        %998 = vmatpush1.bf16.msra.mxu0 0
        %999 = vmatprep.mubr.bf16.mxu0 0
        %1000 = vmatmul.mubr.bf16.gmra.mrb[0].mxu0 %v965
        %v1001 = vpop.f32.mrb[0].mxu0
        %v1002 = vadd.f32 0.0, %v1001
        %v1003 = vpop.f32.mrb[0].mxu0
        %v1004 = vpop.f32.mrb[0].mxu0
        %v1005 = vpop.f32.mrb[0].mxu0
        %1006 = vdwg.mxu0
        %v1009 = vunpack.c.l.b16 %v930
        %v1010 = vunpack.c.l.b16 %v931
        %v1011 = vsel %vm567, %v1010, %v1009
        %v1012 = vpack.c.b16 %v1011, %v1011
        %v1021 = vunpack.c.l.b16 %v914
        %v1022 = vunpack.c.l.b16 %v915
        %v1023 = vunpack.c.l.b16 %v916
        %v1024 = vunpack.c.l.b16 %v917
        %v1025 = vunpack.c.l.b16 %v918
        %v1026 = vunpack.c.l.b16 %v919
        %v1027 = vunpack.c.l.b16 %v920
        %v1028 = vunpack.c.l.b16 %v921
        %v1029 = vpack.c.b16 %v1022, %v1021
        %v1030 = vpack.c.b16 %v1024, %v1023
        %v1031 = vpack.c.b16 %v1026, %v1025
        %v1032 = vpack.c.b16 %v1028, %v1027
        %v1038 = vsel %vm410, %v1012, 0
        %1040 = vmatprep.subr.bf16.mxu0 0
        %1041 = vmatpush1.bf16.msra.mxu0 %v1029
        %1042 = vmatprep.subr.bf16.mxu0 0
        %1043 = vmatpush1.bf16.msra.mxu0 %v1030
        %1044 = vmatprep.subr.bf16.mxu0 0
        %1045 = vmatpush1.bf16.msra.mxu0 %v1031
        %1046 = vmatprep.subr.bf16.mxu0 0
        %1047 = vmatpush1.bf16.msra.mxu0 %v1032
        %1048 = vmatprep.subr.bf16.mxu0 0
        %1049 = vmatpush1.bf16.msra.mxu0 0
        %1050 = vmatprep.subr.bf16.mxu0 0
        %1051 = vmatpush1.bf16.msra.mxu0 0
        %1052 = vmatprep.subr.bf16.mxu0 0
        %1053 = vmatpush1.bf16.msra.mxu0 0
        %1054 = vmatprep.subr.bf16.mxu0 0
        %1055 = vmatpush1.bf16.msra.mxu0 0
        %1056 = vmatprep.subr.bf16.mxu0 0
        %1057 = vmatpush1.bf16.msra.mxu0 0
        %1058 = vmatprep.subr.bf16.mxu0 0
        %1059 = vmatpush1.bf16.msra.mxu0 0
        %1060 = vmatprep.subr.bf16.mxu0 0
        %1061 = vmatpush1.bf16.msra.mxu0 0
        %1062 = vmatprep.subr.bf16.mxu0 0
        %1063 = vmatpush1.bf16.msra.mxu0 0
        %1064 = vmatprep.subr.bf16.mxu0 0
        %1065 = vmatpush1.bf16.msra.mxu0 0
        %1066 = vmatprep.subr.bf16.mxu0 0
        %1067 = vmatpush1.bf16.msra.mxu0 0
        %1068 = vmatprep.subr.bf16.mxu0 0
        %1069 = vmatpush1.bf16.msra.mxu0 0
        %1070 = vmatprep.subr.bf16.mxu0 0
        %1071 = vmatpush1.bf16.msra.mxu0 0
        %1072 = vmatprep.mubr.bf16.mxu0 0
        %1073 = vmatmul.mubr.bf16.gmra.mrb[0].mxu0 %v1038
        %v1074 = vpop.f32.mrb[0].mxu0
        %v1075 = vadd.f32 %v1002, %v1074
        %v1076 = vpop.f32.mrb[0].mxu0
        %v1077 = vpop.f32.mrb[0].mxu0
        %v1078 = vpop.f32.mrb[0].mxu0
        %1079 = vdwg.mxu0
        %v1080 = vlaneseq
        %v1081 = vshrl.u32 %v1080, 7
        %v1082 = vsub.s32 0, %v1081
        %v1083 = vrot.slane %v261, %v1082
        %v1084 = vadd.f32 %v1075, %v1083
        %vm1085 = vcmask 254976
        %1086 = vst.msk [vmem:[%s247] sm:$0x3] %vm1085, %v1084
        %s1087 = sand.u32 %s159, 1
        %s1088 = scalar_lea.sflag [#allocation3], %s1087
        %s1089 = sand.u32 %s159, 1
        %s1090 = smul.addr %s1089, 2
        %s1091 = scalar_lea.vmem [#allocation2], %s1090
        // Predicated region
        $region45: #{tpu_custom_call.1} parent=43 // pred_check
          %p1092 = pneg %p169
        $region46: #{tpu_custom_call.1} parent=43 // pred_check_branch
          %1094 = sbr.rel (%p1092) target = $region48
        $region47: #{tpu_custom_call.1} parent=43 // pred_region
          %s1096 = ssub.s32 32, 32
          %1097 = vsyncadd %s1088, %s1096
          %s1098 = smul.addr %s20, 32
          %s1099 = scalar_lea.hbm %s6, %s1098
          %s1101 = sshll.u32 %s1091, 4
          %s1102 = int_to_ptr.vmem [resolvable:$true] %s1101
          %1104 = dma.vmem_to_hbm [thread:$0]  %s1102, 32, %s1099, %s1088
        $region48: #{tpu_custom_call.1} parent=43 // pred_fallthru
          _
      $region44: #{tpu_custom_call.1} parent=5 // pred_fallthru
        _
      %p1105 = scmp.le.s32.totalorder 2, %s15
      // Predicated region
      $region49: #{tpu_custom_call.1} parent=5 // pred_check
        %p1106 = pneg %p1105
      $region50: #{tpu_custom_call.1} parent=5 // pred_check_branch
        %1108 = sbr.rel (%p1106) target = $region52
      $region51: #{tpu_custom_call.1} parent=5 // pred_region
        %s1109 = ssub.s32 %s15, 2
        // Predicated region
        $region53: #{tpu_custom_call.1} parent=51 // pred_check
          %p1110 = pneg %p175
        $region54: #{tpu_custom_call.1} parent=51 // pred_check_branch
          %1112 = sbr.rel (%p1110) target = $region56
        $region55: #{tpu_custom_call.1} parent=51 // pred_region
          %s1113 = sand.u32 %s160, 1
          %s1114 = scalar_lea.sflag [#allocation3], %s1113
          %s1115 = sand.u32 %s160, 1
          %s1116 = smul.addr %s1115, 2
          %s1117 = scalar_lea.vmem [#allocation2], %s1116
          %1118 = dma.done %s1114, 32
        $region56: #{tpu_custom_call.1} parent=51 // pred_fallthru
          _
      $region52: #{tpu_custom_call.1} parent=5 // pred_fallthru
        _
    $region6: #{tpu_custom_call.1} parent=1 // loop_footer
      %s19 = sadd.s32 1, %s15
    $region7: #{tpu_custom_call.1} parent=1 // loop_footer_branch
      %14 = sbr.rel target = $region3
    $region8: #{tpu_custom_call.1} parent=1 // loop_exit
      _
    %1119 = vsyncpa [#allocation3], 1
    %s1120 = scalar_lea.sflag [#allocation3], 1
    %1121 = vsyncpa %s1120, 1

</llo_original>
